<compile_context>
chip_gen: v5e
topology: v5e:2x2
jax: 0.10.0
libtpu: 0.0.40
codegen_flags: <defaults>
</compile_context>

<pallas_src>
import functools
import math

import jax
import jax.numpy as jnp
from jax.experimental import pallas as pl
from jax.experimental.pallas import tpu as pltpu


def _eca_kernel(w_ref, x_ref, o_ref, *, k, C):
    # w_ref: SMEM (k,) f32 conv taps
    # x_ref / o_ref: VMEM (TB, C, HW) batch-tile slabs (native dtype)
    x = x_ref[...]                                            # no full-slab f32 cast

    # ---- AdaptiveAvgPool2d(1): mean over the spatial (lane) axis, f32 acc ----
    avg = jnp.mean(x, axis=-1, dtype=jnp.float32)             # (TB, C)

    # ---- Conv1d(1, 1, k, padding=k//2, bias=False) along the channel axis ----
    idx = jax.lax.broadcasted_iota(jnp.int32, avg.shape, 1)   # channel index
    half = k // 2
    acc = jnp.zeros_like(avg)
    for j in range(k):                                        # k is tiny & static
        off = j - half
        if off == 0:
            shifted = avg
        else:
            # shifted[c] = avg[(c + off) mod C]; the wrap is masked out below.
            shifted = pltpu.roll(avg, shift=(-off) % C, axis=1)
        valid = (idx + off >= 0) & (idx + off < C)            # zero padding
        acc = acc + w_ref[j] * jnp.where(valid, shifted, 0.0)

    # ---- Sigmoid gate, broadcast-multiply in the native dtype ----
    scale = jax.nn.sigmoid(acc).astype(x.dtype)               # (TB, C)
    o_ref[...] = (x * scale[:, :, None]).astype(o_ref.dtype)


def ecanet_forward(x, conv_w):
    """x: (B, C, H, W); conv_w: (1, 1, k) Conv1d weight (bias-free)."""
    B, C, H, W = x.shape
    k = conv_w.shape[-1]
    HW = H * W
    itemsize = jnp.dtype(x.dtype).itemsize

    x3 = x.reshape(B, C, HW)                       # free view of NCHW layout
    w = conv_w.reshape(k).astype(jnp.float32)

    # --- pick the batch tile TB: big DMA tiles, but VMEM-safe on all gens ---
    slab_bytes = C * HW * itemsize                 # one batch element
    target_tile = 8 << 20                          # aim for ~8 MiB tiles
    max_tile = 12 << 20                            # 4 double-buffered tiles <= 48 MiB (v7x: 64 MiB VMEM)
    tb = max(1, min(B, target_tile // max(slab_bytes, 1)))
    tb = min(tb, max(1, max_tile // max(slab_bytes, 1)))
    if B >= 2 and pl.cdiv(B, tb) < 2:
        tb = pl.cdiv(B, 2)                         # >= 2 parallel steps so both v7x TCs get work
    # TODO(synk): add an HW-tiled two-pass path (pool pass + rescale pass) for
    # stages where one (C, HW) slab exceeds max_tile (e.g. C=256, 224x224), and
    # a lane-dense (B, HW, C) variant for small-HW / large-C stages when the
    # surrounding graph can supply that layout without an extra transpose pass.

    grid = (pl.cdiv(B, tb),)
    tile_bytes = tb * slab_bytes
    # 2x input + 2x output double buffers, plus headroom; capped well under
    # v7x's 64 MiB physical VMEM, raises v5e's 16 MiB / v6e's 32 MiB default.
    vmem_limit = int(min(max(4 * tile_bytes + (4 << 20), 32 << 20), 56 << 20))

    cost = pl.CostEstimate(
        flops=2 * B * C * HW + 2 * B * C * k,      # gate multiply + tiny conv
        transcendentals=B * C,                     # sigmoid
        bytes_accessed=2 * B * C * HW * itemsize + k * 4,
    )

    out = pl.pallas_call(
        functools.partial(_eca_kernel, k=k, C=C),
        out_shape=jax.ShapeDtypeStruct((B, C, HW), x.dtype),
        grid=grid,
        in_specs=[
            pl.BlockSpec(memory_space=pltpu.MemorySpace.SMEM),   # conv taps
            pl.BlockSpec((tb, C, HW), lambda b: (b, 0, 0)),      # x batch tile
        ],
        out_specs=pl.BlockSpec((tb, C, HW), lambda b: (b, 0, 0)),
        input_output_aliases={1: 0},               # in-place-safe rescale of x
        compiler_params=pltpu.CompilerParams(
            dimension_semantics=("parallel",),
            vmem_limit_bytes=vmem_limit),
        cost_estimate=cost,
    )(w, x3)
    return out.reshape(B, C, H, W)


def ecanet_reference(x, conv_w):
    """Pure-JAX reference matching the PyTorch forward."""
    B, C, H, W = x.shape
    k = conv_w.shape[-1]
    w = conv_w.reshape(k)
    avg = x.mean(axis=(2, 3))                                  # (B, C)
    pad = k // 2
    avg_p = jnp.pad(avg, ((0, 0), (pad, pad)))
    conv = sum(w[j] * avg_p[:, j:j + C] for j in range(k))     # (B, C)
    scale = jax.nn.sigmoid(conv)[:, :, None, None]             # (B, C, 1, 1)
    return scale * x


if __name__ == "__main__":
    # Module config: channel=32 -> kernel_size = int(|(log2(32)+1)/2|) = 3 (odd)
    B, C, H, W = 4, 32, 16, 16
    gamma, b = 2, 1
    kernel_size = int(abs((math.log(C, 2) + b) / gamma))
    kernel_size = kernel_size if kernel_size % 2 else kernel_size + 1

    key = jax.random.PRNGKey(0)
    kx, kw = jax.random.split(key)
    x = jax.random.normal(kx, (B, C, H, W), dtype=jnp.float32)
    # Conv1d weight (out=1, in=1, k), uniform like PyTorch default init.
    bound = 1.0 / math.sqrt(kernel_size)
    conv_w = jax.random.uniform(kw, (1, 1, kernel_size), dtype=jnp.float32,
                                minval=-bound, maxval=bound)

    out = ecanet_forward(x, conv_w)
    out = jax.block_until_ready(out)

    ref = ecanet_reference(x, conv_w)
    assert out.shape == (B, C, H, W)
    assert jnp.allclose(out, ref, atol=1e-5, rtol=1e-5)
    print("KERNEL_OK")
</pallas_src>

<mosaic_0001>
module attributes {stable_mosaic.version = 11 : i64} {
  func.func @_eca_kernel(%arg0: i32, %arg1: memref<3xf32, #tpu.memory_space<smem>>, %arg2: memref<2x32x256xf32, #tpu.memory_space<vmem>>, %arg3: memref<2x32x256xf32, #tpu.memory_space<vmem>>) attributes {dimension_semantics = [#tpu.dimension_semantics<parallel>], iteration_bounds = array<i64: 2>, scalar_prefetch = 0 : i64, scratch_operands = 0 : i64, tpu.core_type = #tpu.core_type<tc>, window_params = [{transform_indices = @transform_0, window_bounds = array<i64: 3>}, {transform_indices = @transform_1, window_bounds = array<i64: 2, 32, 256>}, {transform_indices = @transform_2, window_bounds = array<i64: 2, 32, 256>}]} {
    %c0 = arith.constant 0 : index
    %c0_0 = arith.constant 0 : index
    %c0_1 = arith.constant 0 : index
    %0 = vector.load %arg2[%c0, %c0_0, %c0_1] : memref<2x32x256xf32, #tpu.memory_space<vmem>>, vector<2x32x256xf32>
    %cst = arith.constant dense<0.000000e+00> : vector<2x32xf32>
    %1 = vector.multi_reduction <add>, %0, %cst [2] : vector<2x32x256xf32> to vector<2x32xf32>
    %cst_2 = arith.constant 2.560000e+02 : f32
    %2 = vector.broadcast %cst_2 : f32 to vector<2x32xf32>
    %3 = arith.divf %1, %2 : vector<2x32xf32>
    %4 = tpu.iota {dimensions = array<i32: 1>} : vector<2x32xi32>
    %cst_3 = arith.constant 0.000000e+00 : f32
    %5 = vector.broadcast %cst_3 : f32 to vector<2x32xf32>
    %c1_i32 = arith.constant 1 : i32
    %6 = tpu.dynamic_rotate %3 by %c1_i32 dim 1 : vector<2x32xf32>, i32 -> vector<2x32xf32>
    %c-1_i32 = arith.constant -1 : i32
    %7 = vector.broadcast %c-1_i32 : i32 to vector<2x32xi32>
    %8 = arith.addi %4, %7 : vector<2x32xi32>
    %c0_i32 = arith.constant 0 : i32
    %9 = vector.broadcast %c0_i32 : i32 to vector<2x32xi32>
    %10 = arith.cmpi sge, %8, %9 : vector<2x32xi32>
    %c-1_i32_4 = arith.constant -1 : i32
    %11 = vector.broadcast %c-1_i32_4 : i32 to vector<2x32xi32>
    %12 = arith.addi %4, %11 : vector<2x32xi32>
    %c32_i32 = arith.constant 32 : i32
    %13 = vector.broadcast %c32_i32 : i32 to vector<2x32xi32>
    %14 = arith.cmpi slt, %12, %13 : vector<2x32xi32>
    %15 = arith.andi %10, %14 : vector<2x32xi1>
    %c0_5 = arith.constant 0 : index
    %16 = memref.load %arg1[%c0_5] : memref<3xf32, #tpu.memory_space<smem>>
    %cst_6 = arith.constant 0.000000e+00 : f32
    %17 = vector.broadcast %cst_6 : f32 to vector<2x32xf32>
    %18 = arith.select %15, %6, %17 : vector<2x32xi1>, vector<2x32xf32>
    %19 = vector.broadcast %16 : f32 to vector<2x32xf32>
    %20 = arith.mulf %19, %18 : vector<2x32xf32>
    %21 = arith.addf %5, %20 : vector<2x32xf32>
    %c0_i32_7 = arith.constant 0 : i32
    %22 = vector.broadcast %c0_i32_7 : i32 to vector<2x32xi32>
    %23 = arith.addi %4, %22 : vector<2x32xi32>
    %c0_i32_8 = arith.constant 0 : i32
    %24 = vector.broadcast %c0_i32_8 : i32 to vector<2x32xi32>
    %25 = arith.cmpi sge, %23, %24 : vector<2x32xi32>
    %c0_i32_9 = arith.constant 0 : i32
    %26 = vector.broadcast %c0_i32_9 : i32 to vector<2x32xi32>
    %27 = arith.addi %4, %26 : vector<2x32xi32>
    %c32_i32_10 = arith.constant 32 : i32
    %28 = vector.broadcast %c32_i32_10 : i32 to vector<2x32xi32>
    %29 = arith.cmpi slt, %27, %28 : vector<2x32xi32>
    %30 = arith.andi %25, %29 : vector<2x32xi1>
    %c1 = arith.constant 1 : index
    %31 = memref.load %arg1[%c1] : memref<3xf32, #tpu.memory_space<smem>>
    %cst_11 = arith.constant 0.000000e+00 : f32
    %32 = vector.broadcast %cst_11 : f32 to vector<2x32xf32>
    %33 = arith.select %30, %3, %32 : vector<2x32xi1>, vector<2x32xf32>
    %34 = vector.broadcast %31 : f32 to vector<2x32xf32>
    %35 = arith.mulf %34, %33 : vector<2x32xf32>
    %36 = arith.addf %21, %35 : vector<2x32xf32>
    %c31_i32 = arith.constant 31 : i32
    %37 = tpu.dynamic_rotate %3 by %c31_i32 dim 1 : vector<2x32xf32>, i32 -> vector<2x32xf32>
    %c1_i32_12 = arith.constant 1 : i32
    %38 = vector.broadcast %c1_i32_12 : i32 to vector<2x32xi32>
    %39 = arith.addi %4, %38 : vector<2x32xi32>
    %c0_i32_13 = arith.constant 0 : i32
    %40 = vector.broadcast %c0_i32_13 : i32 to vector<2x32xi32>
    %41 = arith.cmpi sge, %39, %40 : vector<2x32xi32>
    %c1_i32_14 = arith.constant 1 : i32
    %42 = vector.broadcast %c1_i32_14 : i32 to vector<2x32xi32>
    %43 = arith.addi %4, %42 : vector<2x32xi32>
    %c32_i32_15 = arith.constant 32 : i32
    %44 = vector.broadcast %c32_i32_15 : i32 to vector<2x32xi32>
    %45 = arith.cmpi slt, %43, %44 : vector<2x32xi32>
    %46 = arith.andi %41, %45 : vector<2x32xi1>
    %c2 = arith.constant 2 : index
    %47 = memref.load %arg1[%c2] : memref<3xf32, #tpu.memory_space<smem>>
    %cst_16 = arith.constant 0.000000e+00 : f32
    %48 = vector.broadcast %cst_16 : f32 to vector<2x32xf32>
    %49 = arith.select %46, %37, %48 : vector<2x32xi1>, vector<2x32xf32>
    %50 = vector.broadcast %47 : f32 to vector<2x32xf32>
    %51 = arith.mulf %50, %49 : vector<2x32xf32>
    %52 = arith.addf %36, %51 : vector<2x32xf32>
    %53 = arith.negf %52 : vector<2x32xf32>
    %54 = math.exp %53 : vector<2x32xf32>
    %cst_17 = arith.constant 1.000000e+00 : f32
    %55 = vector.broadcast %cst_17 : f32 to vector<2x32xf32>
    %56 = arith.addf %55, %54 : vector<2x32xf32>
    %57 = arith.divf %55, %56 : vector<2x32xf32>
    %58 = vector.shape_cast %57 : vector<2x32xf32> to vector<2x32x1xf32>
    %59 = vector.broadcast %58 : vector<2x32x1xf32> to vector<2x32x256xf32>
    %60 = arith.mulf %0, %59 : vector<2x32x256xf32>
    %c0_18 = arith.constant 0 : index
    %c0_19 = arith.constant 0 : index
    %c0_20 = arith.constant 0 : index
    %61 = vector.load %arg3[%c0_18, %c0_19, %c0_20] : memref<2x32x256xf32, #tpu.memory_space<vmem>>, vector<2x32x256xf32>
    tpu.vector_store %arg3[%c0_18, %c0_19, %c0_20], %60 {strides = array<i32>} : memref<2x32x256xf32, #tpu.memory_space<vmem>>, vector<2x32x256xf32>,
    return
  }
  func.func @transform_0(%arg0: i32) -> i32 {
    %c0_i32 = arith.constant 0 : i32
    %c0_i32_0 = arith.constant 0 : i32
    return %c0_i32 : i32
  }
  func.func @transform_1(%arg0: i32) -> (i32, i32, i32) {
    %c0_i32 = arith.constant 0 : i32
    %c0_i32_0 = arith.constant 0 : i32
    %c0_i32_1 = arith.constant 0 : i32
    return %arg0, %c0_i32, %c0_i32_0 : i32, i32, i32
  }
  func.func @transform_2(%arg0: i32) -> (i32, i32, i32) {
    %c0_i32 = arith.constant 0 : i32
    %c0_i32_0 = arith.constant 0 : i32
    %c0_i32_1 = arith.constant 0 : i32
    return %arg0, %c0_i32, %c0_i32_0 : i32, i32, i32
  }
}

</mosaic_0001>

<llo_original>
// kernel: tpu_custom_call.1
$region0: #{tpu_custom_call.1}
  #allocation0 [shape = 'u32[]', space=smem, size = 0x4, offset = 0x4, fixed_abs, tag = 'smem constant byte address 0x4 - core index']
  #allocation1 [shape = 'u32[72,128]{1,0:T(1,128)}', space=vmem, size = 0x9000, scoped, tag = 'internal scratch']
  %s0 = inlined_call_operand.vmem [shape: f32[3], index: 0, kind: input, shape index: {}]
  %s1 = inlined_call_operand.hbm [shape: f32[4,32,256], index: 1, kind: input, shape index: {}, may-alias: {1,2}]
  %s2 = inlined_call_operand.hbm [shape: f32[4,32,256], index: 2, kind: output, shape index: {}, may-alias: {1,2}]
  %s3 = sld [smem:[#allocation0]]
  $region49: #{tpu_custom_call.1} parent=0
    _
  %s5 = ssub.s32 1, %s3
  %s6 = scalar_select 0, %s5, %s3
  $region1: #{tpu_custom_call.1} parent=0
    #allocation2 [shape = 'u8[512]{0}', space=smem, size = 0x200, scoped, tag = 'input window, operand 0, single buffered']
    #allocation3 [shape = 's32[2]{0}', space=sflag, size = 0x8, scoped, tag = 'scoped memory for tpu_custom_call.1']
    #allocation4 [shape = 's32[2]{0}', space=sflag, size = 0x8, scoped, tag = 'scoped memory for tpu_custom_call.1']
    #allocation5 [shape = 's32[2]{0}', space=sflag, size = 0x8, scoped, tag = 'scoped memory for tpu_custom_call.1']
    #allocation6 [shape = 'u8[131072]{0}', space=vmem, size = 0x20000, scoped, tag = 'input window, operand 1']
    #allocation7 [shape = 'u8[131072]{0}', space=vmem, size = 0x20000, scoped, tag = 'output window, operand 0']
    %7 = vsyncpa [#allocation5], 0
    %8 = vsyncpa [#allocation3], 0
    %s9 = scalar_lea.sflag [#allocation3], 1
    %10 = vsyncpa %s9, 0
    %11 = vsyncpa [#allocation4], 0
    %s12 = scalar_lea.sflag [#allocation4], 1
    %13 = vsyncpa %s12, 0
    loop: start=0, step=1, limit=4
    $region2: #{tpu_custom_call.1} parent=1 // loop_pre_header
      _
    $region3: #{tpu_custom_call.1} parent=1 // loop_header
      %s15 = sphi 0, %s19
      %p16 = scmp.ge.s32.totalorder %s15, 4
      %s23 = sphi 0, %s23
      %s25 = sphi 0, %s23
      %s26 = sphi 0, %s25
      %s40 = sphi 0, %s26
      %s46 = sphi 0, %s48
      %s49 = sphi 0, %s46
      %s50 = sphi 0, %s49
      %s66 = sphi 0, %s50
      %s72 = sphi 0, %s74
      %s75 = sphi 0, %s72
      %s76 = sphi 0, %s75
      %s92 = sphi 0, %s76
    $region4: #{tpu_custom_call.1} parent=1 // loop_header_branch
      %18 = sbr.rel (%p16) target = $region8
    $region5: #{tpu_custom_call.1} parent=1 // loop_body
      %s20 = ssub.s32 %s15, 1
      %s21 = ssub.s32 %s15, 2
      %s22 = sadd.s32 %s15, 1
      %s24 = sadd.s32 %s23, 1
      %p27 = scmp.eq.s32.totalorder %s15, 1
      %p28 = scmp.ne.s32.totalorder %s23, %s25
      %p29 = scmp.eq.s32.totalorder %s15, 0
      %p30 = por %p28, %p29
      %p31 = scmp.ne.s32.totalorder %s23, %s25
      %p32 = scmp.eq.s32.totalorder %s20, 1
      %p33 = por %p31, %p32
      %p34 = scmp.ne.s32.totalorder %s25, %s26
      %p35 = scmp.eq.s32.totalorder %s20, 0
      %p36 = por %p34, %p35
      %p37 = scmp.ne.s32.totalorder %s25, %s26
      %p38 = scmp.eq.s32.totalorder %s21, 1
      %p39 = por %p37, %p38
      %p41 = scmp.ne.s32.totalorder %s26, %s40
      %p42 = scmp.eq.s32.totalorder %s21, 0
      %p43 = por %p41, %p42
      %s44 = ssub.s32 %s15, %s22
      %p45 = scmp.eq.s32.totalorder %s44, 0
      %s47 = sadd.s32 %s46, 1
      %s48 = scalar_select %p45, %s46, %s47
      %p51 = pneg %p45
      %p52 = scmp.eq.s32.totalorder %s15, 1
      %p53 = por %p51, %p52
      %p54 = scmp.ne.s32.totalorder %s46, %s49
      %p55 = scmp.eq.s32.totalorder %s15, 0
      %p56 = por %p54, %p55
      %p57 = scmp.ne.s32.totalorder %s46, %s49
      %p58 = scmp.eq.s32.totalorder %s20, 1
      %p59 = por %p57, %p58
      %p60 = scmp.ne.s32.totalorder %s49, %s50
      %p61 = scmp.eq.s32.totalorder %s20, 0
      %p62 = por %p60, %p61
      %p63 = scmp.ne.s32.totalorder %s49, %s50
      %p64 = scmp.eq.s32.totalorder %s21, 1
      %p65 = por %p63, %p64
      %p67 = scmp.ne.s32.totalorder %s50, %s66
      %p68 = scmp.eq.s32.totalorder %s21, 0
      %p69 = por %p67, %p68
      %s70 = ssub.s32 %s15, %s22
      %p71 = scmp.eq.s32.totalorder %s70, 0
      %s73 = sadd.s32 %s72, 1
      %s74 = scalar_select %p71, %s72, %s73
      %p77 = pneg %p71
      %p78 = scmp.eq.s32.totalorder %s15, 1
      %p79 = por %p77, %p78
      %p80 = scmp.ne.s32.totalorder %s72, %s75
      %p81 = scmp.eq.s32.totalorder %s15, 0
      %p82 = por %p80, %p81
      %p83 = scmp.ne.s32.totalorder %s72, %s75
      %p84 = scmp.eq.s32.totalorder %s20, 1
      %p85 = por %p83, %p84
      %p86 = scmp.ne.s32.totalorder %s75, %s76
      %p87 = scmp.eq.s32.totalorder %s20, 0
      %p88 = por %p86, %p87
      %p89 = scmp.ne.s32.totalorder %s75, %s76
      %p90 = scmp.eq.s32.totalorder %s21, 1
      %p91 = por %p89, %p90
      %p93 = scmp.ne.s32.totalorder %s76, %s92
      %p94 = scmp.eq.s32.totalorder %s21, 0
      %p95 = por %p93, %p94
      %p96 = scmp.le.s32.totalorder 1, %s15
      %p97 = scmp.lt.s32.totalorder %s15, 3
      %p98 = pnand %p96, %p97
      %p99 = pneg %p98
      // Predicated region
      $region9: #{tpu_custom_call.1} parent=5 // pred_check
        _
      $region10: #{tpu_custom_call.1} parent=5 // pred_check_branch
        %101 = sbr.rel (%p98) target = $region12
      $region11: #{tpu_custom_call.1} parent=5 // pred_region
        %s102 = ssub.s32 %s15, 1
        // Predicated region
        $region13: #{tpu_custom_call.1} parent=11 // pred_check
          %p103 = pneg %p36
        $region14: #{tpu_custom_call.1} parent=11 // pred_check_branch
          %105 = sbr.rel (%p103) target = $region16
        $region15: #{tpu_custom_call.1} parent=11 // pred_region
          %107 = vsyncadd [#allocation5], 0
          %s109 = sshll.u32 %s0, 4
          %s110 = int_to_ptr.vmem [resolvable:$true] %s109
          %112 = dma.vmem_to_smem %s110, 16, [#allocation2], [#allocation5]
        $region16: #{tpu_custom_call.1} parent=11 // pred_fallthru
          _
      $region12: #{tpu_custom_call.1} parent=5 // pred_fallthru
        _
      %p113 = scmp.lt.s32.totalorder %s15, 2
      // Predicated region
      $region17: #{tpu_custom_call.1} parent=5 // pred_check
        %p114 = pneg %p113
      $region18: #{tpu_custom_call.1} parent=5 // pred_check_branch
        %116 = sbr.rel (%p114) target = $region20
      $region19: #{tpu_custom_call.1} parent=5 // pred_region
        // Predicated region
        $region21: #{tpu_custom_call.1} parent=19 // pred_check
          %p117 = pneg %p56
        $region22: #{tpu_custom_call.1} parent=19 // pred_check_branch
          %119 = sbr.rel (%p117) target = $region24
        $region23: #{tpu_custom_call.1} parent=19 // pred_region
          %s120 = sand.u32 %s46, 1
          %s121 = scalar_lea.sflag [#allocation3], %s120
          %s122 = sand.u32 %s46, 1
          %s123 = smul.addr %s122, 128
          %s124 = scalar_lea.vmem [#allocation6], %s123
          %s125 = smul.u32 2, %s15
          %127 = vsyncadd %s121, 0
          %s128 = smul.addr %s125, 8
          %s129 = smul.addr %s128, 8
          %s130 = scalar_lea.hbm %s1, %s129
          %s131 = sshll.u32 %s130, 4
          %s132 = int_to_ptr.hbm [resolvable:$true] %s131
          %s133 = sshll.u32 %s124, 4
          %s134 = int_to_ptr.vmem [resolvable:$true] %s133
          %139 = dma.hbm_to_vmem [thread:$0]  %s132, 2048, %s134, %s121, 256, 256, 16
        $region24: #{tpu_custom_call.1} parent=19 // pred_fallthru
          _
      $region20: #{tpu_custom_call.1} parent=5 // pred_fallthru
        _
      %p140 = scmp.le.s32.totalorder 1, %s15
      %p141 = scmp.lt.s32.totalorder %s15, 3
      %p142 = pnand %p140, %p141
      %p143 = pneg %p142
      // Predicated region
      $region25: #{tpu_custom_call.1} parent=5 // pred_check
        _
      $region26: #{tpu_custom_call.1} parent=5 // pred_check_branch
        %145 = sbr.rel (%p142) target = $region28
      $region27: #{tpu_custom_call.1} parent=5 // pred_region
        %s146 = ssub.s32 %s15, 1
        // Predicated region
        $region29: #{tpu_custom_call.1} parent=27 // pred_check
          %p147 = pneg %p36
        $region30: #{tpu_custom_call.1} parent=27 // pred_check_branch
          %149 = sbr.rel (%p147) target = $region32
        $region31: #{tpu_custom_call.1} parent=27 // pred_region
          %151 = dma.done [#allocation5], 16
        $region32: #{tpu_custom_call.1} parent=27 // pred_fallthru
          _
        %s152 = sand.u32 %s49, 1
        %s153 = scalar_lea.sflag [#allocation3], %s152
        %s154 = sand.u32 %s49, 1
        %s155 = smul.addr %s154, 128
        %s156 = scalar_lea.vmem [#allocation6], %s155
        // Predicated region
        $region33: #{tpu_custom_call.1} parent=27 // pred_check
          %p157 = pneg %p62
        $region34: #{tpu_custom_call.1} parent=27 // pred_check_branch
          %159 = sbr.rel (%p157) target = $region36
        $region35: #{tpu_custom_call.1} parent=27 // pred_region
          %161 = dma.done %s153, 2048
        $region36: #{tpu_custom_call.1} parent=27 // pred_fallthru
          _
        %162 = sfence
        %p163 = pneg %p36
        %p164 = pneg %p33
        %s165 = sand.u32 %s49, 1
        %s166 = scalar_lea.sflag [#allocation3], %s165
        %s167 = sand.u32 %s49, 1
        %s168 = smul.addr %s167, 128
        %s169 = scalar_lea.vmem [#allocation6], %s168
        %p170 = pneg %p62
        %p171 = pneg %p59
        %p172 = pneg %p88
        %p173 = pneg %p85
        %s174 = sand.u32 %s75, 1
        %s175 = scalar_lea.sflag [#allocation4], %s174
        %s176 = sand.u32 %s75, 1
        %s177 = smul.addr %s176, 128
        %s178 = scalar_lea.vmem [#allocation7], %s177
        %s179 = smul.u32 2, %s20
        %s180 = smul.u32 2, %s20
        %v181 = vld [vmem:[%s156] sm:$0xff]
        %v182 = vld [vmem:[%s156 + $0x8] sm:$0xff]
        %v183 = vld [vmem:[%s156 + $0x10] sm:$0xff]
        %v184 = vld [vmem:[%s156 + $0x18] sm:$0xff]
        %v185 = vld [vmem:[%s156 + $0x20] sm:$0xff]
        %v186 = vld [vmem:[%s156 + $0x28] sm:$0xff]
        %v187 = vld [vmem:[%s156 + $0x30] sm:$0xff]
        %v188 = vld [vmem:[%s156 + $0x38] sm:$0xff]
        %v189 = vld [vmem:[%s156 + $0x40] sm:$0xff]
        %v190 = vld [vmem:[%s156 + $0x48] sm:$0xff]
        %v191 = vld [vmem:[%s156 + $0x50] sm:$0xff]
        %v192 = vld [vmem:[%s156 + $0x58] sm:$0xff]
        %v193 = vld [vmem:[%s156 + $0x60] sm:$0xff]
        %v194 = vld [vmem:[%s156 + $0x68] sm:$0xff]
        %v195 = vld [vmem:[%s156 + $0x70] sm:$0xff]
        %v196 = vld [vmem:[%s156 + $0x78] sm:$0xff]
        %v197 = vadd.f32 %v181, %v182
        %198 = vadd.xlane.f32.xlu0 %v197
        %v199 = vpop.xlane.xlu0 %198
        %v200 = vadd.f32 %v183, %v184
        %201 = vadd.xlane.f32.xlu0 %v200
        %v202 = vpop.xlane.xlu0 %201
        %v203 = vadd.f32 %v185, %v186
        %204 = vadd.xlane.f32.xlu0 %v203
        %v205 = vpop.xlane.xlu0 %204
        %v206 = vadd.f32 %v187, %v188
        %207 = vadd.xlane.f32.xlu0 %v206
        %v208 = vpop.xlane.xlu0 %207
        %v209 = vadd.f32 %v189, %v190
        %210 = vadd.xlane.f32.xlu0 %v209
        %v211 = vpop.xlane.xlu0 %210
        %v212 = vadd.f32 %v191, %v192
        %213 = vadd.xlane.f32.xlu0 %v212
        %v214 = vpop.xlane.xlu0 %213
        %v215 = vadd.f32 %v193, %v194
        %216 = vadd.xlane.f32.xlu0 %v215
        %v217 = vpop.xlane.xlu0 %216
        %v218 = vadd.f32 %v195, %v196
        %219 = vadd.xlane.f32.xlu0 %v218
        %v220 = vpop.xlane.xlu0 %219
        %v221 = vrcp.pop 256.0
        %v222 = vmul.f32 256.0, %v221
        %v223 = vsub.f32 1.0, %v222
        %v224 = vmul.f32 %v221, %v223
        %v225 = vadd.f32 %v221, %v224
        %vm226 = vweird.f32 %v221
        %v227 = vsel %vm226, %v221, %v225
        %v228 = vmul.f32 %v199, %v227
        %v229 = vmul.f32 %v202, %v227
        %v230 = vmul.f32 %v205, %v227
        %v231 = vmul.f32 %v208, %v227
        %v232 = vmul.f32 %v211, %v227
        %v233 = vmul.f32 %v214, %v227
        %v234 = vmul.f32 %v217, %v227
        %v235 = vmul.f32 %v220, %v227
        %v236 = vlaneseq
        %v237 = vand.u32 %v236, 127
        %v246 = vperm.slane %v228, %v237
        %v247 = vadd.s32 %v237, 4294967288
        %v248 = vperm.slane %v229, %v247
        %vm249 = vcmask 130112
        %v250 = vsel %vm249, %v248, %v246
        %v251 = vadd.s32 %v237, 4294967280
        %v252 = vperm.slane %v230, %v251
        %vm253 = vcmask 195712
        %v254 = vsel %vm253, %v252, %v250
        %v255 = vadd.s32 %v237, 4294967272
        %v256 = vperm.slane %v231, %v255
        %vm257 = vcmask 261312
        %v258 = vsel %vm257, %v256, %v254
        %v259 = vperm.slane %v232, %v237
        %v260 = vperm.slane %v233, %v247
        %v261 = vsel %vm249, %v260, %v259
        %v262 = vperm.slane %v234, %v251
        %v263 = vsel %vm253, %v262, %v261
        %v264 = vperm.slane %v235, %v255
        %v265 = vsel %vm257, %v264, %v263
        %vm266 = vcmask 1041409
        %v267 = vsel %vm266, %v265, %v258
        %vm269 = vcmask 1047808
        %270 = vrot.lane.b32.xlu0 %v267, 32
        %v271 = vpop.permute.xlu0 %270
        %v272 = vsel %vm269, %v271, %v267
        %273 = vrot.lane.b32.xlu0 %v272, 32
        %v274 = vpop.permute.xlu0 %273
        %v275 = vsel %vm269, %v274, %v267
        %v276 = vadd.s32 %v237, 4294967295
        %vm277 = vcmp.ge.s32.totalorder %v276, 0
        %vm278 = vcmp.lt.s32.totalorder %v276, 32
        %vm279 = vmand %vm277, %vm278
        %s280 = sld [smem:[#allocation2]]
        %282 = vrot.lane.b32.xlu0 %v275, 97
        %v283 = vpop.permute.xlu0 %282
        %v285 = vsel %vm279, %v283, 0.0
        %v286 = vstv %s280
        %v287 = vmul.f32 %v286, %v285
        %v288 = vadd.f32 %v287, 0.0
        %vm289 = vcmp.ge.s32.totalorder %v237, 0
        %vm290 = vcmp.lt.s32.totalorder %v237, 32
        %vm291 = vmand %vm289, %vm290
        %s292 = sld [smem:[#allocation2 + $0x1]]
        %v293 = vsel %vm291, %v267, 0.0
        %v294 = vstv %s292
        %v295 = vmul.f32 %v294, %v293
        %v296 = vadd.f32 %v288, %v295
        %v297 = vadd.s32 %v237, 1
        %vm298 = vcmp.ge.s32.totalorder %v297, 0
        %vm299 = vcmp.lt.s32.totalorder %v297, 32
        %vm300 = vmand %vm298, %vm299
        %s301 = sld [smem:[#allocation2 + $0x2]]
        %302 = vrot.lane.b32.xlu0 %v275, 127
        %v303 = vpop.permute.xlu0 %302
        %v305 = vsel %vm300, %v303, 0.0
        %v306 = vstv %s301
        %v307 = vmul.f32 %v306, %v305
        %v308 = vadd.f32 %v296, %v307
        %v309 = vxor.u32 %v308, 2147483648
        %v310 = vmul.f32 %v309, 1.442695
        %v311 = vpow.pop %v310
        %v312 = vadd.f32 %v311, 1.0
        %v313 = vrcp.pop %v312
        %v314 = vmul.f32 %v312, %v313
        %v315 = vsub.f32 1.0, %v314
        %v316 = vmul.f32 %v313, %v315
        %v317 = vadd.f32 %v313, %v316
        %vm318 = vweird.f32 %v312
        %vm319 = vweird.f32 %v313
        %vm320 = vmor %vm318, %vm319
        %v321 = vsel %vm320, %v313, %v317
        %v322 = vand.u32 2147483647, %v312
        %vm323 = vcmp.eq.f32.partialorder %v322, 8.507059e+37
        %v324 = vand.u32 %v312, 2147483648
        %v325 = vor.u32 1.1754944e-38, %v324
        %v326 = vsel %vm323, %v325, %v321
        %v327 = vmul.f32 1.0, %v326
        %v328 = vperm.slane %v327, 0
        %v329 = vlaneseq
        %v330 = vshrl.u32 %v329, 7
        %332 = vset.pattern.permute.xlu0 %v330
        %333 = vperm.xlu0 %332, %v328
        %v334 = vpop.permute.xlu0 %333
        %v335 = vlaneseq
        %v336 = vshrl.u32 %v335, 7
        %v337 = vadd.s32 %v336, 8
        %338 = vset.pattern.permute.xlu0 %v337
        %339 = vperm.xlu0 %338, %v328
        %v340 = vpop.permute.xlu0 %339
        %v341 = vlaneseq
        %v342 = vshrl.u32 %v341, 7
        %v343 = vadd.s32 %v342, 16
        %344 = vset.pattern.permute.xlu0 %v343
        %345 = vperm.xlu0 %344, %v328
        %v346 = vpop.permute.xlu0 %345
        %v347 = vlaneseq
        %v348 = vshrl.u32 %v347, 7
        %v349 = vadd.s32 %v348, 24
        %350 = vset.pattern.permute.xlu0 %v349
        %351 = vperm.xlu0 %350, %v328
        %v352 = vpop.permute.xlu0 %351
        %v353 = vperm.slane %v327, 1
        %v354 = vlaneseq
        %v355 = vshrl.u32 %v354, 7
        %357 = vset.pattern.permute.xlu0 %v355
        %358 = vperm.xlu0 %357, %v353
        %v359 = vpop.permute.xlu0 %358
        %v360 = vlaneseq
        %v361 = vshrl.u32 %v360, 7
        %v362 = vadd.s32 %v361, 8
        %363 = vset.pattern.permute.xlu0 %v362
        %364 = vperm.xlu0 %363, %v353
        %v365 = vpop.permute.xlu0 %364
        %v366 = vlaneseq
        %v367 = vshrl.u32 %v366, 7
        %v368 = vadd.s32 %v367, 16
        %369 = vset.pattern.permute.xlu0 %v368
        %370 = vperm.xlu0 %369, %v353
        %v371 = vpop.permute.xlu0 %370
        %v372 = vlaneseq
        %v373 = vshrl.u32 %v372, 7
        %v374 = vadd.s32 %v373, 24
        %375 = vset.pattern.permute.xlu0 %v374
        %376 = vperm.xlu0 %375, %v353
        %v377 = vpop.permute.xlu0 %376
        %v378 = vmul.f32 %v181, %v334
        %v379 = vmul.f32 %v182, %v334
        %v380 = vmul.f32 %v183, %v340
        %v381 = vmul.f32 %v184, %v340
        %v382 = vmul.f32 %v185, %v346
        %v383 = vmul.f32 %v186, %v346
        %v384 = vmul.f32 %v187, %v352
        %v385 = vmul.f32 %v188, %v352
        %v386 = vmul.f32 %v189, %v359
        %v387 = vmul.f32 %v190, %v359
        %v388 = vmul.f32 %v191, %v365
        %v389 = vmul.f32 %v192, %v365
        %v390 = vmul.f32 %v193, %v371
        %v391 = vmul.f32 %v194, %v371
        %v392 = vmul.f32 %v195, %v377
        %v393 = vmul.f32 %v196, %v377
        %394 = vst [vmem:[%s178] sm:$0xff] %v378
        %395 = vst [vmem:[%s178 + $0x8] sm:$0xff] %v379
        %396 = vst [vmem:[%s178 + $0x10] sm:$0xff] %v380
        %397 = vst [vmem:[%s178 + $0x18] sm:$0xff] %v381
        %398 = vst [vmem:[%s178 + $0x20] sm:$0xff] %v382
        %399 = vst [vmem:[%s178 + $0x28] sm:$0xff] %v383
        %400 = vst [vmem:[%s178 + $0x30] sm:$0xff] %v384
        %401 = vst [vmem:[%s178 + $0x38] sm:$0xff] %v385
        %402 = vst [vmem:[%s178 + $0x40] sm:$0xff] %v386
        %403 = vst [vmem:[%s178 + $0x48] sm:$0xff] %v387
        %404 = vst [vmem:[%s178 + $0x50] sm:$0xff] %v388
        %405 = vst [vmem:[%s178 + $0x58] sm:$0xff] %v389
        %406 = vst [vmem:[%s178 + $0x60] sm:$0xff] %v390
        %407 = vst [vmem:[%s178 + $0x68] sm:$0xff] %v391
        %408 = vst [vmem:[%s178 + $0x70] sm:$0xff] %v392
        %409 = vst [vmem:[%s178 + $0x78] sm:$0xff] %v393
        %s410 = sand.u32 %s75, 1
        %s411 = scalar_lea.sflag [#allocation4], %s410
        %s412 = sand.u32 %s75, 1
        %s413 = smul.addr %s412, 128
        %s414 = scalar_lea.vmem [#allocation7], %s413
        // Predicated region
        $region37: #{tpu_custom_call.1} parent=27 // pred_check
          %p415 = pneg %p85
        $region38: #{tpu_custom_call.1} parent=27 // pred_check_branch
          %417 = sbr.rel (%p415) target = $region40
        $region39: #{tpu_custom_call.1} parent=27 // pred_region
          %s418 = smul.u32 2, %s20
          %420 = vsyncadd %s411, 0
          %s421 = smul.addr %s418, 8
          %s422 = smul.addr %s421, 8
          %s423 = scalar_lea.hbm %s2, %s422
          %s424 = sshll.u32 %s414, 4
          %s425 = int_to_ptr.vmem [resolvable:$true] %s424
          %s426 = sshll.u32 %s423, 4
          %s427 = int_to_ptr.hbm [resolvable:$true] %s426
          %432 = dma.vmem_to_hbm [thread:$0]  %s425, 2048, %s427, %s411, 256, 256, 16
        $region40: #{tpu_custom_call.1} parent=27 // pred_fallthru
          _
      $region28: #{tpu_custom_call.1} parent=5 // pred_fallthru
        _
      %p433 = scmp.le.s32.totalorder 2, %s15
      // Predicated region
      $region41: #{tpu_custom_call.1} parent=5 // pred_check
        %p434 = pneg %p433
      $region42: #{tpu_custom_call.1} parent=5 // pred_check_branch
        %436 = sbr.rel (%p434) target = $region44
      $region43: #{tpu_custom_call.1} parent=5 // pred_region
        %s437 = ssub.s32 %s15, 2
        // Predicated region
        $region45: #{tpu_custom_call.1} parent=43 // pred_check
          %p438 = pneg %p91
        $region46: #{tpu_custom_call.1} parent=43 // pred_check_branch
          %440 = sbr.rel (%p438) target = $region48
        $region47: #{tpu_custom_call.1} parent=43 // pred_region
          %s441 = sand.u32 %s76, 1
          %s442 = scalar_lea.sflag [#allocation4], %s441
          %s443 = sand.u32 %s76, 1
          %s444 = smul.addr %s443, 128
          %s445 = scalar_lea.vmem [#allocation7], %s444
          %447 = dma.done %s442, 2048
        $region48: #{tpu_custom_call.1} parent=43 // pred_fallthru
          _
      $region44: #{tpu_custom_call.1} parent=5 // pred_fallthru
        _
    $region6: #{tpu_custom_call.1} parent=1 // loop_footer
      %s19 = sadd.s32 1, %s15
    $region7: #{tpu_custom_call.1} parent=1 // loop_footer_branch
      %14 = sbr.rel target = $region3
    $region8: #{tpu_custom_call.1} parent=1 // loop_exit
      _
    %448 = vsyncpa [#allocation3], 1
    %s449 = scalar_lea.sflag [#allocation3], 1
    %450 = vsyncpa %s449, 1
    %451 = vsyncpa [#allocation4], 1
    %s452 = scalar_lea.sflag [#allocation4], 1
    %453 = vsyncpa %s452, 1
    %454 = vsyncpa [#allocation5], 1
    %s455 = scalar_lea.sflag [#allocation5], 1
    %456 = vsyncpa %s455, 1

</llo_original>
